<compile_context>
chip_gen: v7x
topology: tpu7x:2x2x1
jax: 0.10.0
libtpu: 0.0.40
codegen_flags: <defaults>
</compile_context>

<pallas_src>
from functools import partial

import numpy as np
import jax
import jax.numpy as jnp
from jax.experimental import pallas as pl
from jax.experimental.pallas import tpu as pltpu

# (kernel_size, stride, padding) for the 5 depthwise Conv1d layers
_NET_CFG = ((4, 2, 0), (4, 2, 0), (4, 2, 0), (3, 2, 1), (3, 1, 0))
_L_IN = 64  # Conv1d length = number of Conv2d output channels


def _out_lengths():
    L = _L_IN
    outs = []
    for K, s, p in _NET_CFG:
        L = (L + 2 * p - K) // s + 1
        outs.append(L)
    return tuple(outs)


_L_OUTS = _out_lengths()                                # (31, 14, 6, 3, 1)
_L_INS = (_L_IN,) + _L_OUTS[:-1]                        # (64, 31, 14, 6, 3)
_LO_PAD = tuple(-(-L // 8) * 8 for L in _L_OUTS[:4])    # (32, 16, 8, 8)
_LI_PAD = (_L_IN,) + _LO_PAD[:3]                        # (64, 32, 16, 8)


def _selection_matrices_np():
    """Per-layer stacked 0/1 tap-selection matrices (all taps fused).

    Layer i matrix has shape (K_i * LoP_i, LiP_i); entry [k*LoP_i + t, l] is 1
    iff l == stride*t + k - pad and 0 <= l < Li.  Padded rows/cols are zero, so
    layer-4's zero padding AND the sublane padding of intermediates fall out
    for free, and every in-kernel row slice start/size is a multiple of 8.
    """
    mats = []
    for i, (K, stride, pad) in enumerate(_NET_CFG[:4]):
        Li, Lo = _L_INS[i], _L_OUTS[i]
        LiP, LoP = _LI_PAD[i], _LO_PAD[i]
        s = np.zeros((K * LoP, LiP), np.float32)
        for k in range(K):
            for t in range(Lo):
                l = stride * t + k - pad
                if 0 <= l < Li:
                    s[k * LoP + t, l] = 1.0
        mats.append(s)
    return mats


_SEL_NP = _selection_matrices_np()   # shapes: (128,64) (64,32) (32,16) (24,8)


def disclocal_kernel(pt_ref, w2d_ref, b2d_ref, s0_ref, s1_ref, s2_ref, s3_ref,
                     wt_ref, bt_ref, o_ref):
    # pt_ref : (1, 64, N) bf16  patch elements (rows) x (sample*64 + pos) lanes
    # w2d_ref: (64, 64)  bf16   Conv2d weight [out_ch, patch_elem]
    # b2d_ref: (64, 1)   f32    Conv2d bias (per row)
    # s*_ref : bf16 stacked tap-selection matrices (exact 0/1 in bf16)
    # wt_ref : (20, N)   f32    lane-tiled depthwise weights, row = 4*layer + tap
    # bt_ref : (5, N)    f32    lane-tiled depthwise biases, row = layer
    # o_ref  : (1, 1, N) f32
    # Conv2d(1,64,k=8,s=8) == patchify matmul; out-channel -> rows (length),
    # (sample, spatial patch) -> lanes, so the PyTorch permute is free.
    y = jnp.dot(w2d_ref[...], pt_ref[0],
                preferred_element_type=jnp.float32) + b2d_ref[...]      # (64,N) f32

    sel_refs = (s0_ref, s1_ref, s2_ref, s3_ref)
    for i, (K, _, _) in enumerate(_NET_CFG[:4]):
        LoP = _LO_PAD[i]
        # ONE MXU matmul per layer: all K taps stacked along rows (8-aligned).
        stacked = jnp.dot(sel_refs[i][...], y.astype(jnp.bfloat16),
                          preferred_element_type=jnp.float32)           # (K*LoP, N)
        acc = stacked[0:LoP, :] * wt_ref[4 * i:4 * i + 1, :]
        for k in range(1, K):
            acc = acc + (stacked[k * LoP:(k + 1) * LoP, :]
                         * wt_ref[4 * i + k:4 * i + k + 1, :])
        y = acc + bt_ref[i:i + 1, :]
        y = jnp.maximum(y, 0.2 * y)                                     # LeakyReLU(0.2)
        # rows >= Lo_i of y are padding garbage; the next layer's selection
        # matrix has zero columns there, so they never contribute.

    # final layer: kernel 3, stride 1, no padding, length 3 -> 1 (row slices only)
    out = (y[0:1, :] * wt_ref[16:17, :] +
           y[1:2, :] * wt_ref[17:18, :] +
           y[2:3, :] * wt_ref[18:19, :] + bt_ref[4:5, :])               # (1, N) f32
    o_ref[0] = out


@partial(jax.jit, static_argnames=("block_batch",))
def disclocal_forward(x, params, block_batch=128):
    """x: (B, 1, 64, 64) float32 (NCHW).  Returns (B, 64, 1) float32."""
    w2d, b2d, w1d, b1d = params
    B = x.shape[0]
    # block_batch=128 keeps the per-step tile ~16 MiB (safe for v7x's 64 MiB
    # VMEM with double buffering) and keeps G >= 2 for B >= 256 so the
    # "parallel" grid axis can shard across v7x's two TensorCores.
    TB = min(B, block_batch)          # samples per grid step (batched on lanes)
    G = -(-B // TB)                   # grid size
    B_pad = G * TB
    N = TB * 64                       # lane width per step (>=128 for TB>=2)

    # bf16 input stream: halves the dominant HBM traffic and feeds the MXU at
    # its bf16 rate; accumulation and all elementwise math stay f32.
    xb = x.astype(jnp.bfloat16)
    if B_pad != B:
        xb = jnp.pad(xb, ((0, B_pad - B), (0, 0), (0, 0), (0, 0)))

    # Glue: 8x8 stride-8 patches laid out as (grid, patch_elem, sample*64+pos).
    # Kept inside this jit so XLA fuses the cast+transpose into one pass.
    # TODO(synk): fuse this relayout into the producer of x to remove the last
    # extra HBM round trip of the input (matters most on v5e).
    x6 = xb.reshape(G, TB, 8, 8, 8, 8)                # (g, b, ph, kh, pw, kw)
    pt = x6.transpose(0, 3, 5, 1, 2, 4).reshape(G, 64, N)

    w2d_mat = w2d.reshape(64, 64).astype(jnp.bfloat16)   # (out_ch, patch_elem)
    b2d_col = b2d.reshape(64, 1)
    sels = tuple(jnp.asarray(s, jnp.bfloat16) for s in _SEL_NP)  # exact in bf16
    # lane-tiled depthwise weights/biases: lane j = b_local*64 + channel
    wt = jnp.tile(jnp.transpose(w1d, (0, 2, 1)), (1, 1, TB)).reshape(20, N)
    bt = jnp.tile(b1d, (1, TB))                       # (5, N)

    const = lambda g: (0, 0)
    out = pl.pallas_call(
        disclocal_kernel,
        out_shape=jax.ShapeDtypeStruct((G, 1, N), jnp.float32),
        grid=(G,),
        in_specs=[
            pl.BlockSpec((1, 64, N), lambda g: (g, 0, 0)),
            pl.BlockSpec((64, 64), const),
            pl.BlockSpec((64, 1), const),
            pl.BlockSpec(_SEL_NP[0].shape, const),
            pl.BlockSpec(_SEL_NP[1].shape, const),
            pl.BlockSpec(_SEL_NP[2].shape, const),
            pl.BlockSpec(_SEL_NP[3].shape, const),
            pl.BlockSpec((20, N), const),
            pl.BlockSpec((5, N), const),
        ],
        out_specs=pl.BlockSpec((1, 1, N), lambda g: (g, 0, 0)),
        compiler_params=pltpu.CompilerParams(
            dimension_semantics=("parallel",),
            vmem_limit_bytes=48 * 1024 * 1024),
    )(pt, w2d_mat, b2d_col, *sels, wt, bt)

    return out.reshape(B_pad, 64)[:B].reshape(B, 64, 1)


def init_params(key):
    k1, k2, k3, k4 = jax.random.split(key, 4)
    w2d = jax.random.normal(k1, (64, 1, 8, 8), jnp.float32) * 0.1   # Conv2d weight
    b2d = jax.random.normal(k2, (64,), jnp.float32) * 0.1           # Conv2d bias
    w1d = jax.random.normal(k3, (5, 64, 4), jnp.float32) * 0.2      # depthwise taps (padded to 4)
    b1d = jax.random.normal(k4, (5, 64), jnp.float32) * 0.1
    return w2d, b2d, w1d, b1d


def ref_forward(x, params):
    """Pure-JAX reference reproducing the PyTorch forward."""
    w2d, b2d, w1d, b1d = params
    B = x.shape[0]
    y = jax.lax.conv_general_dilated(
        x, w2d, window_strides=(8, 8), padding="VALID",
        dimension_numbers=("NCHW", "OIHW", "NCHW"))
    y = y + b2d[None, :, None, None]                 # (B, 64ch, 8, 8)
    y = y.reshape(B, 64, 64)                         # Flatten(2,3) -> (B, ch, pos)
    y = jnp.transpose(y, (0, 2, 1))                  # permute -> (B, pos, ch)
    for i, (K, s, p) in enumerate(_NET_CFG):
        w = w1d[i][:, :K].reshape(64, 1, K)
        y = jax.lax.conv_general_dilated(
            y, w, window_strides=(s,), padding=[(p, p)],
            dimension_numbers=("NCH", "OIH", "NCH"), feature_group_count=64)
        y = y + b1d[i][None, :, None]
        if i < len(_NET_CFG) - 1:
            y = jnp.where(y > 0, y, 0.2 * y)
    return y                                         # (B, 64, 1)


if __name__ == "__main__":
    key = jax.random.PRNGKey(0)
    kx, kp = jax.random.split(key)
    B = 2
    # forward implies inch=1 and (H/8)*(W/8) == 64 -> 64x64 spatial
    x = jax.random.normal(kx, (B, 1, 64, 64), jnp.float32)
    params = init_params(kp)

    out = jax.block_until_ready(disclocal_forward(x, params))
    ref = jax.block_until_ready(ref_forward(x, params))

    assert out.shape == (B, 64, 1), out.shape
    if not jnp.allclose(out, ref, rtol=2e-2, atol=2e-2):
        raise AssertionError(
            f"mismatch: max abs diff = {float(jnp.max(jnp.abs(out - ref)))}")
    print("KERNEL_OK")
</pallas_src>

<mosaic_0001>
module attributes {stable_mosaic.version = 11 : i64} {
  func.func @disclocal_kernel(%arg0: i32, %arg1: memref<1x64x128xbf16, #tpu.memory_space<vmem>>, %arg2: memref<64x64xbf16, #tpu.memory_space<vmem>>, %arg3: memref<64x1xf32, #tpu.memory_space<vmem>>, %arg4: memref<128x64xbf16, #tpu.memory_space<vmem>>, %arg5: memref<64x32xbf16, #tpu.memory_space<vmem>>, %arg6: memref<32x16xbf16, #tpu.memory_space<vmem>>, %arg7: memref<24x8xbf16, #tpu.memory_space<vmem>>, %arg8: memref<20x128xf32, #tpu.memory_space<vmem>>, %arg9: memref<5x128xf32, #tpu.memory_space<vmem>>, %arg10: memref<1x1x128xf32, #tpu.memory_space<vmem>>) attributes {dimension_semantics = [#tpu.dimension_semantics<parallel>], iteration_bounds = array<i64: 1>, scalar_prefetch = 0 : i64, scratch_operands = 0 : i64, tpu.core_type = #tpu.core_type<tc>, window_params = [{transform_indices = @transform_0, window_bounds = array<i64: 1, 64, 128>}, {pipeline_mode = #tpu.pipeline_mode<synchronous>, transform_indices = @transform_1, window_bounds = array<i64: 64, 64>}, {pipeline_mode = #tpu.pipeline_mode<synchronous>, transform_indices = @transform_2, window_bounds = array<i64: 64, 1>}, {pipeline_mode = #tpu.pipeline_mode<synchronous>, transform_indices = @transform_3, window_bounds = array<i64: 128, 64>}, {pipeline_mode = #tpu.pipeline_mode<synchronous>, transform_indices = @transform_4, window_bounds = array<i64: 64, 32>}, {pipeline_mode = #tpu.pipeline_mode<synchronous>, transform_indices = @transform_5, window_bounds = array<i64: 32, 16>}, {pipeline_mode = #tpu.pipeline_mode<synchronous>, transform_indices = @transform_6, window_bounds = array<i64: 24, 8>}, {pipeline_mode = #tpu.pipeline_mode<synchronous>, transform_indices = @transform_7, window_bounds = array<i64: 20, 128>}, {pipeline_mode = #tpu.pipeline_mode<synchronous>, transform_indices = @transform_8, window_bounds = array<i64: 5, 128>}, {transform_indices = @transform_9, window_bounds = array<i64: 1, 1, 128>}]} {
    %c0 = arith.constant 0 : index
    %c0_0 = arith.constant 0 : index
    %0 = vector.load %arg2[%c0, %c0_0] : memref<64x64xbf16, #tpu.memory_space<vmem>>, vector<64x64xbf16>
    %c0_1 = arith.constant 0 : index
    %c0_2 = arith.constant 0 : index
    %c0_3 = arith.constant 0 : index
    %1 = vector.load %arg1[%c0_1, %c0_2, %c0_3] : memref<1x64x128xbf16, #tpu.memory_space<vmem>>, vector<1x64x128xbf16>
    %2 = vector.shape_cast %1 : vector<1x64x128xbf16> to vector<64x128xbf16>
    %cst = arith.constant dense<0.000000e+00> : vector<64x128xf32>
    %3 = tpu.matmul %0, %2, %cst {dimension_numbers = #tpu.dot_dimension_numbers<[1], [0], [0], [1], [0, 0, 1, 1], [], []>} : vector<64x64xbf16>, vector<64x128xbf16>, vector<64x128xf32> -> vector<64x128xf32>
    %c0_4 = arith.constant 0 : index
    %c0_5 = arith.constant 0 : index
    %4 = vector.load %arg3[%c0_4, %c0_5] : memref<64x1xf32, #tpu.memory_space<vmem>>, vector<64x1xf32>
    %5 = vector.broadcast %4 : vector<64x1xf32> to vector<64x128xf32>
    %6 = arith.addf %3, %5 : vector<64x128xf32>
    %c0_6 = arith.constant 0 : index
    %c0_7 = arith.constant 0 : index
    %7 = vector.load %arg4[%c0_6, %c0_7] : memref<128x64xbf16, #tpu.memory_space<vmem>>, vector<128x64xbf16>
    %8 = arith.truncf %6 : vector<64x128xf32> to vector<64x128xbf16>
    %cst_8 = arith.constant dense<0.000000e+00> : vector<128x128xf32>
    %9 = tpu.matmul %7, %8, %cst_8 {dimension_numbers = #tpu.dot_dimension_numbers<[1], [0], [0], [1], [0, 0, 1, 1], [], []>} : vector<128x64xbf16>, vector<64x128xbf16>, vector<128x128xf32> -> vector<128x128xf32>
    %10 = vector.extract_strided_slice %9 {offsets = [0, 0], sizes = [32, 128], strides = [1, 1]} : vector<128x128xf32> to vector<32x128xf32>
    %c0_9 = arith.constant 0 : index
    %c0_10 = arith.constant 0 : index
    %11 = vector.load %arg8[%c0_9, %c0_10] : memref<20x128xf32, #tpu.memory_space<vmem>>, vector<1x128xf32>
    %12 = vector.broadcast %11 : vector<1x128xf32> to vector<32x128xf32>
    %13 = arith.mulf %10, %12 : vector<32x128xf32>
    %14 = vector.extract_strided_slice %9 {offsets = [32, 0], sizes = [32, 128], strides = [1, 1]} : vector<128x128xf32> to vector<32x128xf32>
    %c1 = arith.constant 1 : index
    %c0_11 = arith.constant 0 : index
    %15 = vector.load %arg8[%c1, %c0_11] : memref<20x128xf32, #tpu.memory_space<vmem>>, vector<1x128xf32>
    %16 = vector.broadcast %15 : vector<1x128xf32> to vector<32x128xf32>
    %17 = arith.mulf %14, %16 : vector<32x128xf32>
    %18 = arith.addf %13, %17 : vector<32x128xf32>
    %19 = vector.extract_strided_slice %9 {offsets = [64, 0], sizes = [32, 128], strides = [1, 1]} : vector<128x128xf32> to vector<32x128xf32>
    %c2 = arith.constant 2 : index
    %c0_12 = arith.constant 0 : index
    %20 = vector.load %arg8[%c2, %c0_12] : memref<20x128xf32, #tpu.memory_space<vmem>>, vector<1x128xf32>
    %21 = vector.broadcast %20 : vector<1x128xf32> to vector<32x128xf32>
    %22 = arith.mulf %19, %21 : vector<32x128xf32>
    %23 = arith.addf %18, %22 : vector<32x128xf32>
    %24 = vector.extract_strided_slice %9 {offsets = [96, 0], sizes = [32, 128], strides = [1, 1]} : vector<128x128xf32> to vector<32x128xf32>
    %c3 = arith.constant 3 : index
    %c0_13 = arith.constant 0 : index
    %25 = vector.load %arg8[%c3, %c0_13] : memref<20x128xf32, #tpu.memory_space<vmem>>, vector<1x128xf32>
    %26 = vector.broadcast %25 : vector<1x128xf32> to vector<32x128xf32>
    %27 = arith.mulf %24, %26 : vector<32x128xf32>
    %28 = arith.addf %23, %27 : vector<32x128xf32>
    %c0_14 = arith.constant 0 : index
    %c0_15 = arith.constant 0 : index
    %29 = vector.load %arg9[%c0_14, %c0_15] : memref<5x128xf32, #tpu.memory_space<vmem>>, vector<1x128xf32>
    %30 = vector.broadcast %29 : vector<1x128xf32> to vector<32x128xf32>
    %31 = arith.addf %28, %30 : vector<32x128xf32>
    %cst_16 = arith.constant 2.000000e-01 : f32
    %32 = vector.broadcast %cst_16 : f32 to vector<32x128xf32>
    %33 = arith.mulf %32, %31 : vector<32x128xf32>
    %34 = arith.maximumf %31, %33 : vector<32x128xf32>
    %c0_17 = arith.constant 0 : index
    %c0_18 = arith.constant 0 : index
    %35 = vector.load %arg5[%c0_17, %c0_18] : memref<64x32xbf16, #tpu.memory_space<vmem>>, vector<64x32xbf16>
    %36 = arith.truncf %34 : vector<32x128xf32> to vector<32x128xbf16>
    %cst_19 = arith.constant dense<0.000000e+00> : vector<64x128xf32>
    %37 = tpu.matmul %35, %36, %cst_19 {dimension_numbers = #tpu.dot_dimension_numbers<[1], [0], [0], [1], [0, 0, 1, 1], [], []>} : vector<64x32xbf16>, vector<32x128xbf16>, vector<64x128xf32> -> vector<64x128xf32>
    %38 = vector.extract_strided_slice %37 {offsets = [0, 0], sizes = [16, 128], strides = [1, 1]} : vector<64x128xf32> to vector<16x128xf32>
    %c4 = arith.constant 4 : index
    %c0_20 = arith.constant 0 : index
    %39 = vector.load %arg8[%c4, %c0_20] : memref<20x128xf32, #tpu.memory_space<vmem>>, vector<1x128xf32>
    %40 = vector.broadcast %39 : vector<1x128xf32> to vector<16x128xf32>
    %41 = arith.mulf %38, %40 : vector<16x128xf32>
    %42 = vector.extract_strided_slice %37 {offsets = [16, 0], sizes = [16, 128], strides = [1, 1]} : vector<64x128xf32> to vector<16x128xf32>
    %c5 = arith.constant 5 : index
    %c0_21 = arith.constant 0 : index
    %43 = vector.load %arg8[%c5, %c0_21] : memref<20x128xf32, #tpu.memory_space<vmem>>, vector<1x128xf32>
    %44 = vector.broadcast %43 : vector<1x128xf32> to vector<16x128xf32>
    %45 = arith.mulf %42, %44 : vector<16x128xf32>
    %46 = arith.addf %41, %45 : vector<16x128xf32>
    %47 = vector.extract_strided_slice %37 {offsets = [32, 0], sizes = [16, 128], strides = [1, 1]} : vector<64x128xf32> to vector<16x128xf32>
    %c6 = arith.constant 6 : index
    %c0_22 = arith.constant 0 : index
    %48 = vector.load %arg8[%c6, %c0_22] : memref<20x128xf32, #tpu.memory_space<vmem>>, vector<1x128xf32>
    %49 = vector.broadcast %48 : vector<1x128xf32> to vector<16x128xf32>
    %50 = arith.mulf %47, %49 : vector<16x128xf32>
    %51 = arith.addf %46, %50 : vector<16x128xf32>
    %52 = vector.extract_strided_slice %37 {offsets = [48, 0], sizes = [16, 128], strides = [1, 1]} : vector<64x128xf32> to vector<16x128xf32>
    %c7 = arith.constant 7 : index
    %c0_23 = arith.constant 0 : index
    %53 = vector.load %arg8[%c7, %c0_23] : memref<20x128xf32, #tpu.memory_space<vmem>>, vector<1x128xf32>
    %54 = vector.broadcast %53 : vector<1x128xf32> to vector<16x128xf32>
    %55 = arith.mulf %52, %54 : vector<16x128xf32>
    %56 = arith.addf %51, %55 : vector<16x128xf32>
    %c1_24 = arith.constant 1 : index
    %c0_25 = arith.constant 0 : index
    %57 = vector.load %arg9[%c1_24, %c0_25] : memref<5x128xf32, #tpu.memory_space<vmem>>, vector<1x128xf32>
    %58 = vector.broadcast %57 : vector<1x128xf32> to vector<16x128xf32>
    %59 = arith.addf %56, %58 : vector<16x128xf32>
    %cst_26 = arith.constant 2.000000e-01 : f32
    %60 = vector.broadcast %cst_26 : f32 to vector<16x128xf32>
    %61 = arith.mulf %60, %59 : vector<16x128xf32>
    %62 = arith.maximumf %59, %61 : vector<16x128xf32>
    %c0_27 = arith.constant 0 : index
    %c0_28 = arith.constant 0 : index
    %63 = vector.load %arg6[%c0_27, %c0_28] : memref<32x16xbf16, #tpu.memory_space<vmem>>, vector<32x16xbf16>
    %64 = arith.truncf %62 : vector<16x128xf32> to vector<16x128xbf16>
    %cst_29 = arith.constant dense<0.000000e+00> : vector<32x128xf32>
    %65 = tpu.matmul %63, %64, %cst_29 {dimension_numbers = #tpu.dot_dimension_numbers<[1], [0], [0], [1], [0, 0, 1, 1], [], []>} : vector<32x16xbf16>, vector<16x128xbf16>, vector<32x128xf32> -> vector<32x128xf32>
    %66 = vector.extract_strided_slice %65 {offsets = [0, 0], sizes = [8, 128], strides = [1, 1]} : vector<32x128xf32> to vector<8x128xf32>
    %c8 = arith.constant 8 : index
    %c0_30 = arith.constant 0 : index
    %67 = vector.load %arg8[%c8, %c0_30] : memref<20x128xf32, #tpu.memory_space<vmem>>, vector<1x128xf32>
    %68 = vector.broadcast %67 : vector<1x128xf32> to vector<8x128xf32>
    %69 = arith.mulf %66, %68 : vector<8x128xf32>
    %70 = vector.extract_strided_slice %65 {offsets = [8, 0], sizes = [8, 128], strides = [1, 1]} : vector<32x128xf32> to vector<8x128xf32>
    %c9 = arith.constant 9 : index
    %c0_31 = arith.constant 0 : index
    %71 = vector.load %arg8[%c9, %c0_31] : memref<20x128xf32, #tpu.memory_space<vmem>>, vector<1x128xf32>
    %72 = vector.broadcast %71 : vector<1x128xf32> to vector<8x128xf32>
    %73 = arith.mulf %70, %72 : vector<8x128xf32>
    %74 = arith.addf %69, %73 : vector<8x128xf32>
    %75 = vector.extract_strided_slice %65 {offsets = [16, 0], sizes = [8, 128], strides = [1, 1]} : vector<32x128xf32> to vector<8x128xf32>
    %c10 = arith.constant 10 : index
    %c0_32 = arith.constant 0 : index
    %76 = vector.load %arg8[%c10, %c0_32] : memref<20x128xf32, #tpu.memory_space<vmem>>, vector<1x128xf32>
    %77 = vector.broadcast %76 : vector<1x128xf32> to vector<8x128xf32>
    %78 = arith.mulf %75, %77 : vector<8x128xf32>
    %79 = arith.addf %74, %78 : vector<8x128xf32>
    %80 = vector.extract_strided_slice %65 {offsets = [24, 0], sizes = [8, 128], strides = [1, 1]} : vector<32x128xf32> to vector<8x128xf32>
    %c11 = arith.constant 11 : index
    %c0_33 = arith.constant 0 : index
    %81 = vector.load %arg8[%c11, %c0_33] : memref<20x128xf32, #tpu.memory_space<vmem>>, vector<1x128xf32>
    %82 = vector.broadcast %81 : vector<1x128xf32> to vector<8x128xf32>
    %83 = arith.mulf %80, %82 : vector<8x128xf32>
    %84 = arith.addf %79, %83 : vector<8x128xf32>
    %c2_34 = arith.constant 2 : index
    %c0_35 = arith.constant 0 : index
    %85 = vector.load %arg9[%c2_34, %c0_35] : memref<5x128xf32, #tpu.memory_space<vmem>>, vector<1x128xf32>
    %86 = vector.broadcast %85 : vector<1x128xf32> to vector<8x128xf32>
    %87 = arith.addf %84, %86 : vector<8x128xf32>
    %cst_36 = arith.constant 2.000000e-01 : f32
    %88 = vector.broadcast %cst_36 : f32 to vector<8x128xf32>
    %89 = arith.mulf %88, %87 : vector<8x128xf32>
    %90 = arith.maximumf %87, %89 : vector<8x128xf32>
    %c0_37 = arith.constant 0 : index
    %c0_38 = arith.constant 0 : index
    %91 = vector.load %arg7[%c0_37, %c0_38] : memref<24x8xbf16, #tpu.memory_space<vmem>>, vector<24x8xbf16>
    %92 = arith.truncf %90 : vector<8x128xf32> to vector<8x128xbf16>
    %cst_39 = arith.constant dense<0.000000e+00> : vector<24x128xf32>
    %93 = tpu.matmul %91, %92, %cst_39 {dimension_numbers = #tpu.dot_dimension_numbers<[1], [0], [0], [1], [0, 0, 1, 1], [], []>} : vector<24x8xbf16>, vector<8x128xbf16>, vector<24x128xf32> -> vector<24x128xf32>
    %94 = vector.extract_strided_slice %93 {offsets = [0, 0], sizes = [8, 128], strides = [1, 1]} : vector<24x128xf32> to vector<8x128xf32>
    %c12 = arith.constant 12 : index
    %c0_40 = arith.constant 0 : index
    %95 = vector.load %arg8[%c12, %c0_40] : memref<20x128xf32, #tpu.memory_space<vmem>>, vector<1x128xf32>
    %96 = vector.broadcast %95 : vector<1x128xf32> to vector<8x128xf32>
    %97 = arith.mulf %94, %96 : vector<8x128xf32>
    %98 = vector.extract_strided_slice %93 {offsets = [8, 0], sizes = [8, 128], strides = [1, 1]} : vector<24x128xf32> to vector<8x128xf32>
    %c13 = arith.constant 13 : index
    %c0_41 = arith.constant 0 : index
    %99 = vector.load %arg8[%c13, %c0_41] : memref<20x128xf32, #tpu.memory_space<vmem>>, vector<1x128xf32>
    %100 = vector.broadcast %99 : vector<1x128xf32> to vector<8x128xf32>
    %101 = arith.mulf %98, %100 : vector<8x128xf32>
    %102 = arith.addf %97, %101 : vector<8x128xf32>
    %103 = vector.extract_strided_slice %93 {offsets = [16, 0], sizes = [8, 128], strides = [1, 1]} : vector<24x128xf32> to vector<8x128xf32>
    %c14 = arith.constant 14 : index
    %c0_42 = arith.constant 0 : index
    %104 = vector.load %arg8[%c14, %c0_42] : memref<20x128xf32, #tpu.memory_space<vmem>>, vector<1x128xf32>
    %105 = vector.broadcast %104 : vector<1x128xf32> to vector<8x128xf32>
    %106 = arith.mulf %103, %105 : vector<8x128xf32>
    %107 = arith.addf %102, %106 : vector<8x128xf32>
    %c3_43 = arith.constant 3 : index
    %c0_44 = arith.constant 0 : index
    %108 = vector.load %arg9[%c3_43, %c0_44] : memref<5x128xf32, #tpu.memory_space<vmem>>, vector<1x128xf32>
    %109 = vector.broadcast %108 : vector<1x128xf32> to vector<8x128xf32>
    %110 = arith.addf %107, %109 : vector<8x128xf32>
    %cst_45 = arith.constant 2.000000e-01 : f32
    %111 = vector.broadcast %cst_45 : f32 to vector<8x128xf32>
    %112 = arith.mulf %111, %110 : vector<8x128xf32>
    %113 = arith.maximumf %110, %112 : vector<8x128xf32>
    %114 = vector.extract_strided_slice %113 {offsets = [0, 0], sizes = [1, 128], strides = [1, 1]} : vector<8x128xf32> to vector<1x128xf32>
    %c16 = arith.constant 16 : index
    %c0_46 = arith.constant 0 : index
    %115 = vector.load %arg8[%c16, %c0_46] : memref<20x128xf32, #tpu.memory_space<vmem>>, vector<1x128xf32>
    %116 = arith.mulf %114, %115 : vector<1x128xf32>
    %117 = vector.extract_strided_slice %113 {offsets = [1, 0], sizes = [1, 128], strides = [1, 1]} : vector<8x128xf32> to vector<1x128xf32>
    %c17 = arith.constant 17 : index
    %c0_47 = arith.constant 0 : index
    %118 = vector.load %arg8[%c17, %c0_47] : memref<20x128xf32, #tpu.memory_space<vmem>>, vector<1x128xf32>
    %119 = arith.mulf %117, %118 : vector<1x128xf32>
    %120 = arith.addf %116, %119 : vector<1x128xf32>
    %121 = vector.extract_strided_slice %113 {offsets = [2, 0], sizes = [1, 128], strides = [1, 1]} : vector<8x128xf32> to vector<1x128xf32>
    %c18 = arith.constant 18 : index
    %c0_48 = arith.constant 0 : index
    %122 = vector.load %arg8[%c18, %c0_48] : memref<20x128xf32, #tpu.memory_space<vmem>>, vector<1x128xf32>
    %123 = arith.mulf %121, %122 : vector<1x128xf32>
    %124 = arith.addf %120, %123 : vector<1x128xf32>
    %c4_49 = arith.constant 4 : index
    %c0_50 = arith.constant 0 : index
    %125 = vector.load %arg9[%c4_49, %c0_50] : memref<5x128xf32, #tpu.memory_space<vmem>>, vector<1x128xf32>
    %126 = arith.addf %124, %125 : vector<1x128xf32>
    %c0_51 = arith.constant 0 : index
    %c0_52 = arith.constant 0 : index
    %c0_53 = arith.constant 0 : index
    %127 = vector.load %arg10[%c0_51, %c0_52, %c0_53] : memref<1x1x128xf32, #tpu.memory_space<vmem>>, vector<1x1x128xf32>
    %128 = vector.shape_cast %127 : vector<1x1x128xf32> to vector<1x128xf32>
    %129 = vector.shape_cast %126 : vector<1x128xf32> to vector<1x1x128xf32>
    tpu.vector_store %arg10[%c0_51, %c0_52, %c0_53], %129 {strides = array<i32>} : memref<1x1x128xf32, #tpu.memory_space<vmem>>, vector<1x1x128xf32>,
    return
  }
  func.func @transform_0(%arg0: i32) -> (i32, i32, i32) {
    %c0_i32 = arith.constant 0 : i32
    %c0_i32_0 = arith.constant 0 : i32
    %c0_i32_1 = arith.constant 0 : i32
    return %arg0, %c0_i32, %c0_i32_0 : i32, i32, i32
  }
  func.func @transform_1(%arg0: i32) -> (i32, i32) {
    %c0_i32 = arith.constant 0 : i32
    %c0_i32_0 = arith.constant 0 : i32
    %c0_i32_1 = arith.constant 0 : i32
    return %c0_i32, %c0_i32_0 : i32, i32
  }
  func.func @transform_2(%arg0: i32) -> (i32, i32) {
    %c0_i32 = arith.constant 0 : i32
    %c0_i32_0 = arith.constant 0 : i32
    %c0_i32_1 = arith.constant 0 : i32
    return %c0_i32, %c0_i32_0 : i32, i32
  }
  func.func @transform_3(%arg0: i32) -> (i32, i32) {
    %c0_i32 = arith.constant 0 : i32
    %c0_i32_0 = arith.constant 0 : i32
    %c0_i32_1 = arith.constant 0 : i32
    return %c0_i32, %c0_i32_0 : i32, i32
  }
  func.func @transform_4(%arg0: i32) -> (i32, i32) {
    %c0_i32 = arith.constant 0 : i32
    %c0_i32_0 = arith.constant 0 : i32
    %c0_i32_1 = arith.constant 0 : i32
    return %c0_i32, %c0_i32_0 : i32, i32
  }
  func.func @transform_5(%arg0: i32) -> (i32, i32) {
    %c0_i32 = arith.constant 0 : i32
    %c0_i32_0 = arith.constant 0 : i32
    %c0_i32_1 = arith.constant 0 : i32
    return %c0_i32, %c0_i32_0 : i32, i32
  }
  func.func @transform_6(%arg0: i32) -> (i32, i32) {
    %c0_i32 = arith.constant 0 : i32
    %c0_i32_0 = arith.constant 0 : i32
    %c0_i32_1 = arith.constant 0 : i32
    return %c0_i32, %c0_i32_0 : i32, i32
  }
  func.func @transform_7(%arg0: i32) -> (i32, i32) {
    %c0_i32 = arith.constant 0 : i32
    %c0_i32_0 = arith.constant 0 : i32
    %c0_i32_1 = arith.constant 0 : i32
    return %c0_i32, %c0_i32_0 : i32, i32
  }
  func.func @transform_8(%arg0: i32) -> (i32, i32) {
    %c0_i32 = arith.constant 0 : i32
    %c0_i32_0 = arith.constant 0 : i32
    %c0_i32_1 = arith.constant 0 : i32
    return %c0_i32, %c0_i32_0 : i32, i32
  }
  func.func @transform_9(%arg0: i32) -> (i32, i32, i32) {
    %c0_i32 = arith.constant 0 : i32
    %c0_i32_0 = arith.constant 0 : i32
    %c0_i32_1 = arith.constant 0 : i32
    return %arg0, %c0_i32, %c0_i32_0 : i32, i32, i32
  }
}

</mosaic_0001>

<llo_original>
// kernel: tile.14
$region0: #{tile.14}
  %s0 = inlined_call_operand.vmem [shape: f32[5,1,4,2,64], index: 0, kind: input, shape index: {}]
  %s1 = inlined_call_operand.vmem [shape: f32[20,128], index: 1, kind: output, shape index: {}]
  $region1: #{tile.14} parent=0
    #allocation0 [shape = 'u8[81920]{0}', space=vmem, size = 0x14000, scoped, tag = 'scoped mem for input reshape']
    %s3 = sshllo.u32 0, 2
    %s4 = smul.addr 2, 19
    %s5 = scalar_lea.vmem %s0, %s4
    %v6 = vld [vmem:[%s5] sm:%s3]
    %s7 = scalar_lea.vmem [#allocation0], 152
    %8 = vst [vmem:[%s7] sm:%s3] %v6
    %s9 = smul.addr 2, 18
    %s10 = scalar_lea.vmem %s0, %s9
    %v11 = vld [vmem:[%s10] sm:%s3]
    %s12 = scalar_lea.vmem [#allocation0], 144
    %13 = vst [vmem:[%s12] sm:%s3] %v11
    %s14 = smul.addr 2, 17
    %s15 = scalar_lea.vmem %s0, %s14
    %v16 = vld [vmem:[%s15] sm:%s3]
    %s17 = scalar_lea.vmem [#allocation0], 136
    %18 = vst [vmem:[%s17] sm:%s3] %v16
    %s19 = smul.addr 2, 16
    %s20 = scalar_lea.vmem %s0, %s19
    %v21 = vld [vmem:[%s20] sm:%s3]
    %s22 = scalar_lea.vmem [#allocation0], 128
    %23 = vst [vmem:[%s22] sm:%s3] %v21
    %s24 = smul.addr 2, 15
    %s25 = scalar_lea.vmem %s0, %s24
    %v26 = vld [vmem:[%s25] sm:%s3]
    %s27 = scalar_lea.vmem [#allocation0], 120
    %28 = vst [vmem:[%s27] sm:%s3] %v26
    %s29 = smul.addr 2, 14
    %s30 = scalar_lea.vmem %s0, %s29
    %v31 = vld [vmem:[%s30] sm:%s3]
    %s32 = scalar_lea.vmem [#allocation0], 112
    %33 = vst [vmem:[%s32] sm:%s3] %v31
    %s34 = smul.addr 2, 13
    %s35 = scalar_lea.vmem %s0, %s34
    %v36 = vld [vmem:[%s35] sm:%s3]
    %s37 = scalar_lea.vmem [#allocation0], 104
    %38 = vst [vmem:[%s37] sm:%s3] %v36
    %s39 = smul.addr 2, 12
    %s40 = scalar_lea.vmem %s0, %s39
    %v41 = vld [vmem:[%s40] sm:%s3]
    %s42 = scalar_lea.vmem [#allocation0], 96
    %43 = vst [vmem:[%s42] sm:%s3] %v41
    %s44 = smul.addr 2, 11
    %s45 = scalar_lea.vmem %s0, %s44
    %v46 = vld [vmem:[%s45] sm:%s3]
    %s47 = scalar_lea.vmem [#allocation0], 88
    %48 = vst [vmem:[%s47] sm:%s3] %v46
    %s49 = smul.addr 2, 10
    %s50 = scalar_lea.vmem %s0, %s49
    %v51 = vld [vmem:[%s50] sm:%s3]
    %s52 = scalar_lea.vmem [#allocation0], 80
    %53 = vst [vmem:[%s52] sm:%s3] %v51
    %s54 = smul.addr 2, 9
    %s55 = scalar_lea.vmem %s0, %s54
    %v56 = vld [vmem:[%s55] sm:%s3]
    %s57 = scalar_lea.vmem [#allocation0], 72
    %58 = vst [vmem:[%s57] sm:%s3] %v56
    %s59 = smul.addr 2, 8
    %s60 = scalar_lea.vmem %s0, %s59
    %v61 = vld [vmem:[%s60] sm:%s3]
    %s62 = scalar_lea.vmem [#allocation0], 64
    %63 = vst [vmem:[%s62] sm:%s3] %v61
    %s64 = smul.addr 2, 7
    %s65 = scalar_lea.vmem %s0, %s64
    %v66 = vld [vmem:[%s65] sm:%s3]
    %s67 = scalar_lea.vmem [#allocation0], 56
    %68 = vst [vmem:[%s67] sm:%s3] %v66
    %s69 = smul.addr 2, 6
    %s70 = scalar_lea.vmem %s0, %s69
    %v71 = vld [vmem:[%s70] sm:%s3]
    %s72 = scalar_lea.vmem [#allocation0], 48
    %73 = vst [vmem:[%s72] sm:%s3] %v71
    %s74 = smul.addr 2, 5
    %s75 = scalar_lea.vmem %s0, %s74
    %v76 = vld [vmem:[%s75] sm:%s3]
    %s77 = scalar_lea.vmem [#allocation0], 40
    %78 = vst [vmem:[%s77] sm:%s3] %v76
    %s79 = smul.addr 2, 4
    %s80 = scalar_lea.vmem %s0, %s79
    %v81 = vld [vmem:[%s80] sm:%s3]
    %s82 = scalar_lea.vmem [#allocation0], 32
    %83 = vst [vmem:[%s82] sm:%s3] %v81
    %s84 = smul.addr 2, 3
    %s85 = scalar_lea.vmem %s0, %s84
    %v86 = vld [vmem:[%s85] sm:%s3]
    %s87 = scalar_lea.vmem [#allocation0], 24
    %88 = vst [vmem:[%s87] sm:%s3] %v86
    %s89 = smul.addr 2, 2
    %s90 = scalar_lea.vmem %s0, %s89
    %v91 = vld [vmem:[%s90] sm:%s3]
    %s92 = scalar_lea.vmem [#allocation0], 16
    %93 = vst [vmem:[%s92] sm:%s3] %v91
    %s94 = scalar_lea.vmem %s0, 2
    %v95 = vld [vmem:[%s94] sm:%s3]
    %s96 = scalar_lea.vmem [#allocation0], 8
    %97 = vst [vmem:[%s96] sm:%s3] %v95
    %v98 = vld [vmem:[%s0] sm:%s3]
    %99 = vst [vmem:[#allocation0] sm:%s3] %v98
    %v100 = vld [vmem:[#allocation0] ss:$8 sm:$0xf]
    %v101 = vld [vmem:[#allocation0] ss:$8 sm:$0xf0]
    %vm102 = vcmask 1047556
    %v103 = vsel %vm102, %v101, %v100
    %vm104 = vcmask 523264
    %105 = vst.msk [vmem:[%s1] sm:$0xff] %vm104, %v103
    %s106 = scalar_lea.vmem [#allocation0], 64
    %v107 = vld [vmem:[%s106] ss:$8 sm:$0xf]
    %s108 = scalar_lea.vmem [#allocation0], 64
    %v109 = vld [vmem:[%s108] ss:$8 sm:$0xf0]
    %vm110 = vcmask 1047556
    %v111 = vsel %vm110, %v109, %v107
    %vm112 = vcmask 523264
    %s113 = scalar_lea.vmem %s1, 8
    %114 = vst.msk [vmem:[%s113] sm:$0xff] %vm112, %v111
    %s115 = scalar_lea.vmem [#allocation0], 128
    %v116 = vld [vmem:[%s115] ss:$8 sm:$0xf]
    %vm117 = vcmask 523264
    %s118 = scalar_lea.vmem %s1, 16
    %119 = vst.msk [vmem:[%s118] sm:$0xf] %vm117, %v116
    %s120 = scalar_lea.vmem [#allocation0], 1
    %v121 = vld [vmem:[%s120] ss:$8 sm:$0xf]
    %s122 = scalar_lea.vmem [#allocation0], 1
    %v123 = vld [vmem:[%s122] ss:$8 sm:$0xf0]
    %vm124 = vcmask 1047556
    %v125 = vsel %vm124, %v123, %v121
    %126 = vrot.lane.b32.xlu0 %v125, 64
    %v127 = vpop.permute.xlu0 %126
    %vm128 = vcmask 1048064
    %129 = vst.msk [vmem:[%s1] sm:$0xff] %vm128, %v127
    %s130 = scalar_lea.vmem [#allocation0], 65
    %v131 = vld [vmem:[%s130] ss:$8 sm:$0xf]
    %s132 = scalar_lea.vmem [#allocation0], 65
    %v133 = vld [vmem:[%s132] ss:$8 sm:$0xf0]
    %vm134 = vcmask 1047556
    %v135 = vsel %vm134, %v133, %v131
    %136 = vrot.lane.b32.xlu0 %v135, 64
    %v137 = vpop.permute.xlu0 %136
    %vm138 = vcmask 1048064
    %s139 = scalar_lea.vmem %s1, 8
    %140 = vst.msk [vmem:[%s139] sm:$0xff] %vm138, %v137
    %s141 = scalar_lea.vmem [#allocation0], 129
    %v142 = vld [vmem:[%s141] ss:$8 sm:$0xf]
    %143 = vrot.lane.b32.xlu0 %v142, 64
    %v144 = vpop.permute.xlu0 %143
    %vm145 = vcmask 1048064
    %s146 = scalar_lea.vmem %s1, 16
    %147 = vst.msk [vmem:[%s146] sm:$0xf] %vm145, %v144

// kernel: tile.19
$region0: #{tile.19}
  %s0 = inlined_call_operand.vmem [shape: f32[5,2,64], index: 0, kind: input, shape index: {}]
  %s1 = inlined_call_operand.vmem [shape: f32[5,128], index: 1, kind: output, shape index: {}]
  $region1: #{tile.19} parent=0
    #allocation0 [shape = 'u8[20480]{0}', space=vmem, size = 0x5000, scoped, tag = 'scoped mem for input reshape']
    %s3 = sshllo.u32 0, 2
    %s4 = smul.addr 2, 4
    %s5 = scalar_lea.vmem %s0, %s4
    %v6 = vld [vmem:[%s5] sm:%s3]
    %s7 = scalar_lea.vmem [#allocation0], 32
    %8 = vst [vmem:[%s7] sm:%s3] %v6
    %s9 = smul.addr 2, 3
    %s10 = scalar_lea.vmem %s0, %s9
    %v11 = vld [vmem:[%s10] sm:%s3]
    %s12 = scalar_lea.vmem [#allocation0], 24
    %13 = vst [vmem:[%s12] sm:%s3] %v11
    %s14 = smul.addr 2, 2
    %s15 = scalar_lea.vmem %s0, %s14
    %v16 = vld [vmem:[%s15] sm:%s3]
    %s17 = scalar_lea.vmem [#allocation0], 16
    %18 = vst [vmem:[%s17] sm:%s3] %v16
    %s19 = scalar_lea.vmem %s0, 2
    %v20 = vld [vmem:[%s19] sm:%s3]
    %s21 = scalar_lea.vmem [#allocation0], 8
    %22 = vst [vmem:[%s21] sm:%s3] %v20
    %v23 = vld [vmem:[%s0] sm:%s3]
    %24 = vst [vmem:[#allocation0] sm:%s3] %v23
    %v25 = vld [vmem:[#allocation0] ss:$8 sm:$0xf]
    %s26 = scalar_lea.vmem [#allocation0], 28
    %v27 = vld [vmem:[%s26] sm:$0x10]
    %vm28 = vcmask 1044484
    %v29 = vsel %vm28, %v27, %v25
    %vm30 = vcmask 523264
    %31 = vst.msk [vmem:[%s1] sm:$0x1f] %vm30, %v29
    %s32 = scalar_lea.vmem [#allocation0], 1
    %v33 = vld [vmem:[%s32] ss:$8 sm:$0xf]
    %s34 = scalar_lea.vmem [#allocation0], 29
    %v35 = vld [vmem:[%s34] sm:$0x10]
    %vm36 = vcmask 1044484
    %v37 = vsel %vm36, %v35, %v33
    %38 = vrot.lane.b32.xlu0 %v37, 64
    %v39 = vpop.permute.xlu0 %38
    %vm40 = vcmask 1048064
    %41 = vst.msk [vmem:[%s1] sm:$0x1f] %vm40, %v39

// kernel: disclocal_forward.1
$region0: #{disclocal_forward.1}
  #allocation0 [shape = 'u32[]', space=smem, size = 0x4, offset = 0x4, fixed_abs, tag = 'smem constant byte address 0x4 - core index']
  #allocation1 [shape = 'u32[144,128]{1,0:T(1,128)}', space=vmem, size = 0x12000, scoped, tag = 'internal scratch']
  %s0 = inlined_call_operand.vmem [shape: bf16[1,64,128], index: 0, kind: input, shape index: {}]
  %s1 = inlined_call_operand.vmem [shape: bf16[64,64], index: 1, kind: input, shape index: {}]
  %s2 = inlined_call_operand.vmem [shape: f32[64,1], index: 2, kind: input, shape index: {}]
  %s3 = inlined_call_operand.vmem [shape: bf16[128,64], index: 3, kind: input, shape index: {}]
  %s4 = inlined_call_operand.vmem [shape: bf16[64,32], index: 4, kind: input, shape index: {}]
  %s5 = inlined_call_operand.vmem [shape: bf16[32,16], index: 5, kind: input, shape index: {}]
  %s6 = inlined_call_operand.vmem [shape: bf16[24,8], index: 6, kind: input, shape index: {}]
  %s7 = inlined_call_operand.vmem [shape: f32[20,128], index: 7, kind: input, shape index: {}]
  %s8 = inlined_call_operand.vmem [shape: f32[5,128], index: 8, kind: input, shape index: {}]
  %s9 = inlined_call_operand.vmem [shape: f32[1,1,128], index: 9, kind: output, shape index: {}]
  %s10 = sld [smem:[#allocation0]]
  $region46: #{disclocal_forward.1} parent=0
    _
  %s12 = ssub.s32 1, %s10
  %s13 = scalar_select 0, %s12, %s10
  // Predicated region
  $region2: #{disclocal_forward.1} parent=0 // pred_check
    _
  $region3: #{disclocal_forward.1} parent=0 // pred_check_branch
    %15 = sbr.rel (0) target = $region5
  $region4: #{disclocal_forward.1} parent=0 // pred_region
    _
  $region5: #{disclocal_forward.1} parent=0 // pred_fallthru
    _
  // Predicated region
  $region6: #{disclocal_forward.1} parent=0 // pred_check
    _
  $region7: #{disclocal_forward.1} parent=0 // pred_check_branch
    %17 = sbr.rel (0) target = $region9
  $region8: #{disclocal_forward.1} parent=0 // pred_region
    _
  $region9: #{disclocal_forward.1} parent=0 // pred_fallthru
    _
  // Predicated region
  $region10: #{disclocal_forward.1} parent=0 // pred_check
    _
  $region11: #{disclocal_forward.1} parent=0 // pred_check_branch
    %19 = sbr.rel (0) target = $region13
  $region12: #{disclocal_forward.1} parent=0 // pred_region
    _
  $region13: #{disclocal_forward.1} parent=0 // pred_fallthru
    _
  // Predicated region
  $region14: #{disclocal_forward.1} parent=0 // pred_check
    _
  $region15: #{disclocal_forward.1} parent=0 // pred_check_branch
    %21 = sbr.rel (0) target = $region17
  $region16: #{disclocal_forward.1} parent=0 // pred_region
    _
  $region17: #{disclocal_forward.1} parent=0 // pred_fallthru
    _
  // Predicated region
  $region18: #{disclocal_forward.1} parent=0 // pred_check
    _
  $region19: #{disclocal_forward.1} parent=0 // pred_check_branch
    %23 = sbr.rel (0) target = $region21
  $region20: #{disclocal_forward.1} parent=0 // pred_region
    _
  $region21: #{disclocal_forward.1} parent=0 // pred_fallthru
    _
  // Predicated region
  $region22: #{disclocal_forward.1} parent=0 // pred_check
    _
  $region23: #{disclocal_forward.1} parent=0 // pred_check_branch
    %25 = sbr.rel (0) target = $region25
  $region24: #{disclocal_forward.1} parent=0 // pred_region
    _
  $region25: #{disclocal_forward.1} parent=0 // pred_fallthru
    _
  // Predicated region
  $region26: #{disclocal_forward.1} parent=0 // pred_check
    _
  $region27: #{disclocal_forward.1} parent=0 // pred_check_branch
    %27 = sbr.rel (0) target = $region29
  $region28: #{disclocal_forward.1} parent=0 // pred_region
    _
  $region29: #{disclocal_forward.1} parent=0 // pred_fallthru
    _
  // Predicated region
  $region30: #{disclocal_forward.1} parent=0 // pred_check
    _
  $region31: #{disclocal_forward.1} parent=0 // pred_check_branch
    %29 = sbr.rel (0) target = $region33
  $region32: #{disclocal_forward.1} parent=0 // pred_region
    _
  $region33: #{disclocal_forward.1} parent=0 // pred_fallthru
    _
  // Predicated region
  $region34: #{disclocal_forward.1} parent=0 // pred_check
    _
  $region35: #{disclocal_forward.1} parent=0 // pred_check_branch
    %31 = sbr.rel (0) target = $region37
  $region36: #{disclocal_forward.1} parent=0 // pred_region
    _
  $region37: #{disclocal_forward.1} parent=0 // pred_fallthru
    _
  %v33 = vld [vmem:[%s1] sm:$0xf]
  %v34 = vld [vmem:[%s1 + $0x4] sm:$0xf]
  %v35 = vld [vmem:[%s1 + $0x8] sm:$0xf]
  %v36 = vld [vmem:[%s1 + $0xc] sm:$0xf]
  %v37 = vld [vmem:[%s1 + $0x10] sm:$0xf]
  %v38 = vld [vmem:[%s1 + $0x14] sm:$0xf]
  %v39 = vld [vmem:[%s1 + $0x18] sm:$0xf]
  %v40 = vld [vmem:[%s1 + $0x1c] sm:$0xf]
  %v41 = vld [vmem:[%s0] sm:$0xf]
  %v42 = vld [vmem:[%s0 + $0x4] sm:$0xf]
  %v43 = vld [vmem:[%s0 + $0x8] sm:$0xf]
  %v44 = vld [vmem:[%s0 + $0xc] sm:$0xf]
  %v45 = vld [vmem:[%s0 + $0x10] sm:$0xf]
  %v46 = vld [vmem:[%s0 + $0x14] sm:$0xf]
  %v47 = vld [vmem:[%s0 + $0x18] sm:$0xf]
  %v48 = vld [vmem:[%s0 + $0x1c] sm:$0xf]
  %v49 = vld [vmem:[%s2] sm:$0xff]
  %v50 = vld [vmem:[%s2 + $0x8] sm:$0xff]
  %v51 = vld [vmem:[%s2 + $0x10] sm:$0xff]
  %v52 = vld [vmem:[%s2 + $0x18] sm:$0xff]
  %v53 = vld [vmem:[%s2 + $0x20] sm:$0xff]
  %v54 = vld [vmem:[%s2 + $0x28] sm:$0xff]
  %v55 = vld [vmem:[%s2 + $0x30] sm:$0xff]
  %v56 = vld [vmem:[%s2 + $0x38] sm:$0xff]
  %58 = vset.pattern.permute.xlu0 0
  %59 = vperm.xlu0 %58, %v49
  %v60 = vpop.permute.xlu0 %59
  %63 = vset.pattern.permute.xlu0 0
  %64 = vperm.xlu0 %63, %v50
  %v65 = vpop.permute.xlu0 %64
  %68 = vset.pattern.permute.xlu0 0
  %69 = vperm.xlu0 %68, %v51
  %v70 = vpop.permute.xlu0 %69
  %73 = vset.pattern.permute.xlu0 0
  %74 = vperm.xlu0 %73, %v52
  %v75 = vpop.permute.xlu0 %74
  %78 = vset.pattern.permute.xlu0 0
  %79 = vperm.xlu0 %78, %v53
  %v80 = vpop.permute.xlu0 %79
  %83 = vset.pattern.permute.xlu0 0
  %84 = vperm.xlu0 %83, %v54
  %v85 = vpop.permute.xlu0 %84
  %88 = vset.pattern.permute.xlu0 0
  %89 = vperm.xlu0 %88, %v55
  %v90 = vpop.permute.xlu0 %89
  %93 = vset.pattern.permute.xlu0 0
  %94 = vperm.xlu0 %93, %v56
  %v95 = vpop.permute.xlu0 %94
  %v105 = vunpack.c.l.b16 %v33
  %v106 = vunpack.c.l.b16 %v34
  %v107 = vunpack.c.l.b16 %v35
  %v108 = vunpack.c.l.b16 %v36
  %v109 = vunpack.c.l.b16 %v37
  %v110 = vunpack.c.l.b16 %v38
  %v111 = vunpack.c.l.b16 %v39
  %v112 = vunpack.c.l.b16 %v40
  %v113 = vpack.c.b16 %v106, %v105
  %v114 = vpack.c.b16 %v108, %v107
  %v115 = vpack.c.b16 %v110, %v109
  %v116 = vpack.c.b16 %v112, %v111
  %v125 = vunpack.c.l.b16 %v41
  %v126 = vunpack.c.l.b16 %v42
  %v127 = vunpack.c.l.b16 %v43
  %v128 = vunpack.c.l.b16 %v44
  %v129 = vunpack.c.l.b16 %v45
  %v130 = vunpack.c.l.b16 %v46
  %v131 = vunpack.c.l.b16 %v47
  %v132 = vunpack.c.l.b16 %v48
  %v133 = vpack.c.b16 %v126, %v125
  %v134 = vpack.c.b16 %v128, %v127
  %v135 = vpack.c.b16 %v130, %v129
  %v136 = vpack.c.b16 %v132, %v131
  %vm141 = vcmask 523264
  %v143 = vsel %vm141, %v113, 0
  %v146 = vsel %vm141, %v114, 0
  %v149 = vsel %vm141, %v115, 0
  %v152 = vsel %vm141, %v116, 0
  %154 = vmatprep.subr.bf16.mxu0 0
  %155 = vmatpush1.bf16.msra.mxu0 %v133
  %156 = vmatprep.subr.bf16.mxu0 0
  %157 = vmatpush1.bf16.msra.mxu0 %v134
  %158 = vmatprep.subr.bf16.mxu0 0
  %159 = vmatpush1.bf16.msra.mxu0 %v135
  %160 = vmatprep.subr.bf16.mxu0 0
  %161 = vmatpush1.bf16.msra.mxu0 %v136
  %162 = vmatprep.subr.bf16.mxu0 0
  %163 = vmatpush1.bf16.msra.mxu0 0
  %164 = vmatprep.subr.bf16.mxu0 0
  %165 = vmatpush1.bf16.msra.mxu0 0
  %166 = vmatprep.subr.bf16.mxu0 0
  %167 = vmatpush1.bf16.msra.mxu0 0
  %168 = vmatprep.subr.bf16.mxu0 0
  %169 = vmatpush1.bf16.msra.mxu0 0
  %170 = vmatprep.subr.bf16.mxu0 0
  %171 = vmatpush1.bf16.msra.mxu0 0
  %172 = vmatprep.subr.bf16.mxu0 0
  %173 = vmatpush1.bf16.msra.mxu0 0
  %174 = vmatprep.subr.bf16.mxu0 0
  %175 = vmatpush1.bf16.msra.mxu0 0
  %176 = vmatprep.subr.bf16.mxu0 0
  %177 = vmatpush1.bf16.msra.mxu0 0
  %178 = vmatprep.subr.bf16.mxu0 0
  %179 = vmatpush1.bf16.msra.mxu0 0
  %180 = vmatprep.subr.bf16.mxu0 0
  %181 = vmatpush1.bf16.msra.mxu0 0
  %182 = vmatprep.subr.bf16.mxu0 0
  %183 = vmatpush1.bf16.msra.mxu0 0
  %184 = vmatprep.subr.bf16.mxu0 0
  %185 = vmatpush1.bf16.msra.mxu0 0
  %186 = vmatprep.mubr.bf16.mxu0 0
  %187 = vmatmul.mubr.bf16.gmra.mrb[0].mxu0 %v143
  %v188 = vpop.f32.mrb[0].mxu0
  %v189 = vadd.f32 %v60, %v188
  %v190 = vpop.f32.mrb[0].mxu0
  %v191 = vpop.f32.mrb[0].mxu0
  %v192 = vadd.f32 %v65, %v191
  %v193 = vpop.f32.mrb[0].mxu0
  %194 = vmatprep.mubr.bf16.mxu0 0
  %195 = vmatmul.mubr.bf16.gmra.mrb[0].mxu0 %v146
  %v196 = vpop.f32.mrb[0].mxu0
  %v197 = vadd.f32 %v70, %v196
  %v198 = vpop.f32.mrb[0].mxu0
  %v199 = vpop.f32.mrb[0].mxu0
  %v200 = vadd.f32 %v75, %v199
  %v201 = vpop.f32.mrb[0].mxu0
  %202 = vmatprep.mubr.bf16.mxu0 0
  %203 = vmatmul.mubr.bf16.gmra.mrb[0].mxu0 %v149
  %v204 = vpop.f32.mrb[0].mxu0
  %v205 = vadd.f32 %v80, %v204
  %v206 = vpop.f32.mrb[0].mxu0
  %v207 = vpop.f32.mrb[0].mxu0
  %v208 = vadd.f32 %v85, %v207
  %v209 = vpop.f32.mrb[0].mxu0
  %210 = vmatprep.mubr.bf16.mxu0 0
  %211 = vmatmul.mubr.bf16.gmra.mrb[0].mxu0 %v152
  %v212 = vpop.f32.mrb[0].mxu0
  %v213 = vadd.f32 %v90, %v212
  %v214 = vpop.f32.mrb[0].mxu0
  %v215 = vpop.f32.mrb[0].mxu0
  %v216 = vadd.f32 %v95, %v215
  %v217 = vpop.f32.mrb[0].mxu0
  %218 = vdwg.mxu0
  %v219 = vld [vmem:[%s3] sm:$0xf]
  %v220 = vld [vmem:[%s3 + $0x4] sm:$0xf]
  %v221 = vld [vmem:[%s3 + $0x8] sm:$0xf]
  %v222 = vld [vmem:[%s3 + $0xc] sm:$0xf]
  %v223 = vld [vmem:[%s3 + $0x10] sm:$0xf]
  %v224 = vld [vmem:[%s3 + $0x14] sm:$0xf]
  %v225 = vld [vmem:[%s3 + $0x18] sm:$0xf]
  %v226 = vld [vmem:[%s3 + $0x1c] sm:$0xf]
  %v227 = vld [vmem:[%s3 + $0x20] sm:$0xf]
  %v228 = vld [vmem:[%s3 + $0x24] sm:$0xf]
  %v229 = vld [vmem:[%s3 + $0x28] sm:$0xf]
  %v230 = vld [vmem:[%s3 + $0x2c] sm:$0xf]
  %v231 = vld [vmem:[%s3 + $0x30] sm:$0xf]
  %v232 = vld [vmem:[%s3 + $0x34] sm:$0xf]
  %v233 = vld [vmem:[%s3 + $0x38] sm:$0xf]
  %v234 = vld [vmem:[%s3 + $0x3c] sm:$0xf]
  %v235 = vpack.c.bf16 %v192, %v189
  %v236 = vpack.c.bf16 %v200, %v197
  %v237 = vpack.c.bf16 %v208, %v205
  %v238 = vpack.c.bf16 %v216, %v213
  %v255 = vunpack.c.l.b16 %v219
  %v256 = vunpack.c.l.b16 %v220
  %v257 = vunpack.c.l.b16 %v221
  %v258 = vunpack.c.l.b16 %v222
  %v259 = vunpack.c.l.b16 %v223
  %v260 = vunpack.c.l.b16 %v224
  %v261 = vunpack.c.l.b16 %v225
  %v262 = vunpack.c.l.b16 %v226
  %v263 = vunpack.c.l.b16 %v227
  %v264 = vunpack.c.l.b16 %v228
  %v265 = vunpack.c.l.b16 %v229
  %v266 = vunpack.c.l.b16 %v230
  %v267 = vunpack.c.l.b16 %v231
  %v268 = vunpack.c.l.b16 %v232
  %v269 = vunpack.c.l.b16 %v233
  %v270 = vunpack.c.l.b16 %v234
  %v271 = vpack.c.b16 %v256, %v255
  %v272 = vpack.c.b16 %v258, %v257
  %v273 = vpack.c.b16 %v260, %v259
  %v274 = vpack.c.b16 %v262, %v261
  %v275 = vpack.c.b16 %v264, %v263
  %v276 = vpack.c.b16 %v266, %v265
  %v277 = vpack.c.b16 %v268, %v267
  %v278 = vpack.c.b16 %v270, %v269
  %v280 = vsel %vm141, %v271, 0
  %v283 = vsel %vm141, %v272, 0
  %v286 = vsel %vm141, %v273, 0
  %v289 = vsel %vm141, %v274, 0
  %v292 = vsel %vm141, %v275, 0
  %v295 = vsel %vm141, %v276, 0
  %v298 = vsel %vm141, %v277, 0
  %v301 = vsel %vm141, %v278, 0
  %303 = vmatprep.subr.bf16.mxu0 0
  %304 = vmatpush1.bf16.msra.mxu0 %v235
  %305 = vmatprep.subr.bf16.mxu0 0
  %306 = vmatpush1.bf16.msra.mxu0 %v236
  %307 = vmatprep.subr.bf16.mxu0 0
  %308 = vmatpush1.bf16.msra.mxu0 %v237
  %309 = vmatprep.subr.bf16.mxu0 0
  %310 = vmatpush1.bf16.msra.mxu0 %v238
  %311 = vmatprep.subr.bf16.mxu0 0
  %312 = vmatpush1.bf16.msra.mxu0 0
  %313 = vmatprep.subr.bf16.mxu0 0
  %314 = vmatpush1.bf16.msra.mxu0 0
  %315 = vmatprep.subr.bf16.mxu0 0
  %316 = vmatpush1.bf16.msra.mxu0 0
  %317 = vmatprep.subr.bf16.mxu0 0
  %318 = vmatpush1.bf16.msra.mxu0 0
  %319 = vmatprep.subr.bf16.mxu0 0
  %320 = vmatpush1.bf16.msra.mxu0 0
  %321 = vmatprep.subr.bf16.mxu0 0
  %322 = vmatpush1.bf16.msra.mxu0 0
  %323 = vmatprep.subr.bf16.mxu0 0
  %324 = vmatpush1.bf16.msra.mxu0 0
  %325 = vmatprep.subr.bf16.mxu0 0
  %326 = vmatpush1.bf16.msra.mxu0 0
  %327 = vmatprep.subr.bf16.mxu0 0
  %328 = vmatpush1.bf16.msra.mxu0 0
  %329 = vmatprep.subr.bf16.mxu0 0
  %330 = vmatpush1.bf16.msra.mxu0 0
  %331 = vmatprep.subr.bf16.mxu0 0
  %332 = vmatpush1.bf16.msra.mxu0 0
  %333 = vmatprep.subr.bf16.mxu0 0
  %334 = vmatpush1.bf16.msra.mxu0 0
  %335 = vmatprep.mubr.bf16.mxu0 0
  %336 = vmatmul.mubr.bf16.gmra.mrb[0].mxu0 %v280
  %v337 = vpop.f32.mrb[0].mxu0
  %v338 = vadd.f32 0.0, %v337
  %v339 = vpop.f32.mrb[0].mxu0
  %v340 = vpop.f32.mrb[0].mxu0
  %v341 = vadd.f32 0.0, %v340
  %v342 = vpop.f32.mrb[0].mxu0
  %343 = vmatprep.mubr.bf16.mxu0 0
  %344 = vmatmul.mubr.bf16.gmra.mrb[0].mxu0 %v283
  %v345 = vpop.f32.mrb[0].mxu0
  %v346 = vadd.f32 0.0, %v345
  %v347 = vpop.f32.mrb[0].mxu0
  %v348 = vpop.f32.mrb[0].mxu0
  %v349 = vadd.f32 0.0, %v348
  %v350 = vpop.f32.mrb[0].mxu0
  %351 = vmatprep.mubr.bf16.mxu0 0
  %352 = vmatmul.mubr.bf16.gmra.mrb[0].mxu0 %v286
  %v353 = vpop.f32.mrb[0].mxu0
  %v354 = vadd.f32 0.0, %v353
  %v355 = vpop.f32.mrb[0].mxu0
  %v356 = vpop.f32.mrb[0].mxu0
  %v357 = vadd.f32 0.0, %v356
  %v358 = vpop.f32.mrb[0].mxu0
  %359 = vmatprep.mubr.bf16.mxu0 0
  %360 = vmatmul.mubr.bf16.gmra.mrb[0].mxu0 %v289
  %v361 = vpop.f32.mrb[0].mxu0
  %v362 = vadd.f32 0.0, %v361
  %v363 = vpop.f32.mrb[0].mxu0
  %v364 = vpop.f32.mrb[0].mxu0
  %v365 = vadd.f32 0.0, %v364
  %v366 = vpop.f32.mrb[0].mxu0
  %367 = vmatprep.mubr.bf16.mxu0 0
  %368 = vmatmul.mubr.bf16.gmra.mrb[0].mxu0 %v292
  %v369 = vpop.f32.mrb[0].mxu0
  %v370 = vadd.f32 0.0, %v369
  %v371 = vpop.f32.mrb[0].mxu0
  %v372 = vpop.f32.mrb[0].mxu0
  %v373 = vadd.f32 0.0, %v372
  %v374 = vpop.f32.mrb[0].mxu0
  %375 = vmatprep.mubr.bf16.mxu0 0
  %376 = vmatmul.mubr.bf16.gmra.mrb[0].mxu0 %v295
  %v377 = vpop.f32.mrb[0].mxu0
  %v378 = vadd.f32 0.0, %v377
  %v379 = vpop.f32.mrb[0].mxu0
  %v380 = vpop.f32.mrb[0].mxu0
  %v381 = vadd.f32 0.0, %v380
  %v382 = vpop.f32.mrb[0].mxu0
  %383 = vmatprep.mubr.bf16.mxu0 0
  %384 = vmatmul.mubr.bf16.gmra.mrb[0].mxu0 %v298
  %v385 = vpop.f32.mrb[0].mxu0
  %v386 = vadd.f32 0.0, %v385
  %v387 = vpop.f32.mrb[0].mxu0
  %v388 = vpop.f32.mrb[0].mxu0
  %v389 = vadd.f32 0.0, %v388
  %v390 = vpop.f32.mrb[0].mxu0
  %391 = vmatprep.mubr.bf16.mxu0 0
  %392 = vmatmul.mubr.bf16.gmra.mrb[0].mxu0 %v301
  %v393 = vpop.f32.mrb[0].mxu0
  %v394 = vadd.f32 0.0, %v393
  %v395 = vpop.f32.mrb[0].mxu0
  %v396 = vpop.f32.mrb[0].mxu0
  %v397 = vadd.f32 0.0, %v396
  %v398 = vpop.f32.mrb[0].mxu0
  %399 = vdwg.mxu0
  %v400 = vld [vmem:[%s7] sm:$0x1]
  %v401 = vlaneseq
  %v402 = vshrl.u32 %v401, 7
  %v403 = vsub.s32 0, %v402
  %v404 = vrot.slane %v400, %v403
  %v405 = vmul.f32 %v338, %v404
  %v406 = vmul.f32 %v341, %v404
  %v407 = vmul.f32 %v346, %v404
  %v408 = vmul.f32 %v349, %v404
  %v409 = vld [vmem:[%s7 + $0x1] sm:$0x1]
  %v410 = vlaneseq
  %v411 = vshrl.u32 %v410, 7
  %v412 = vsub.s32 0, %v411
  %v413 = vrot.slane %v409, %v412
  %v414 = vmul.f32 %v354, %v413
  %v415 = vmul.f32 %v357, %v413
  %v416 = vmul.f32 %v362, %v413
  %v417 = vmul.f32 %v365, %v413
  %v418 = vadd.f32 %v405, %v414
  %v419 = vadd.f32 %v406, %v415
  %v420 = vadd.f32 %v407, %v416
  %v421 = vadd.f32 %v408, %v417
  %v422 = vld [vmem:[%s7 + $0x2] sm:$0x1]
  %v423 = vlaneseq
  %v424 = vshrl.u32 %v423, 7
  %v425 = vsub.s32 0, %v424
  %v426 = vrot.slane %v422, %v425
  %v427 = vmul.f32 %v370, %v426
  %v428 = vmul.f32 %v373, %v426
  %v429 = vmul.f32 %v378, %v426
  %v430 = vmul.f32 %v381, %v426
  %v431 = vadd.f32 %v418, %v427
  %v432 = vadd.f32 %v419, %v428
  %v433 = vadd.f32 %v420, %v429
  %v434 = vadd.f32 %v421, %v430
  %v435 = vld [vmem:[%s7 + $0x3] sm:$0x1]
  %v436 = vlaneseq
  %v437 = vshrl.u32 %v436, 7
  %v438 = vsub.s32 0, %v437
  %v439 = vrot.slane %v435, %v438
  %v440 = vmul.f32 %v386, %v439
  %v441 = vmul.f32 %v389, %v439
  %v442 = vmul.f32 %v394, %v439
  %v443 = vmul.f32 %v397, %v439
  %v444 = vadd.f32 %v431, %v440
  %v445 = vadd.f32 %v432, %v441
  %v446 = vadd.f32 %v433, %v442
  %v447 = vadd.f32 %v434, %v443
  %v448 = vld [vmem:[%s8] sm:$0x1]
  %v449 = vlaneseq
  %v450 = vshrl.u32 %v449, 7
  %v451 = vsub.s32 0, %v450
  %v452 = vrot.slane %v448, %v451
  %v453 = vadd.f32 %v444, %v452
  %v454 = vadd.f32 %v445, %v452
  %v455 = vadd.f32 %v446, %v452
  %v456 = vadd.f32 %v447, %v452
  %v457 = vmul.f32 %v453, 0.2
  %v458 = vmul.f32 %v454, 0.2
  %v459 = vmul.f32 %v455, 0.2
  %v460 = vmul.f32 %v456, 0.2
  %v461 = vmax.f32 %v453, %v457
  %v462 = vmax.f32 %v454, %v458
  %v463 = vmax.f32 %v455, %v459
  %v464 = vmax.f32 %v456, %v460
  %v465 = vld [vmem:[%s4] sm:$0xf]
  %v466 = vld [vmem:[%s4 + $0x4] sm:$0xf]
  %v467 = vld [vmem:[%s4 + $0x8] sm:$0xf]
  %v468 = vld [vmem:[%s4 + $0xc] sm:$0xf]
  %v469 = vld [vmem:[%s4 + $0x10] sm:$0xf]
  %v470 = vld [vmem:[%s4 + $0x14] sm:$0xf]
  %v471 = vld [vmem:[%s4 + $0x18] sm:$0xf]
  %v472 = vld [vmem:[%s4 + $0x1c] sm:$0xf]
  %v473 = vpack.c.bf16 %v462, %v461
  %v474 = vpack.c.bf16 %v464, %v463
  %v483 = vunpack.c.l.b16 %v465
  %v484 = vunpack.c.l.b16 %v466
  %v485 = vunpack.c.l.b16 %v467
  %v486 = vunpack.c.l.b16 %v468
  %v487 = vunpack.c.l.b16 %v469
  %v488 = vunpack.c.l.b16 %v470
  %v489 = vunpack.c.l.b16 %v471
  %v490 = vunpack.c.l.b16 %v472
  %v491 = vpack.c.b16 %v484, %v483
  %v492 = vpack.c.b16 %v486, %v485
  %v493 = vpack.c.b16 %v488, %v487
  %v494 = vpack.c.b16 %v490, %v489
  %vm495 = vcmask 261120
  %v497 = vsel %vm495, %v491, 0
  %v500 = vsel %vm495, %v492, 0
  %v503 = vsel %vm495, %v493, 0
  %v506 = vsel %vm495, %v494, 0
  %508 = vmatprep.subr.bf16.mxu0 0
  %509 = vmatpush1.bf16.msra.mxu0 %v473
  %510 = vmatprep.subr.bf16.mxu0 0
  %511 = vmatpush1.bf16.msra.mxu0 %v474
  %512 = vmatprep.subr.bf16.mxu0 0
  %513 = vmatpush1.bf16.msra.mxu0 0
  %514 = vmatprep.subr.bf16.mxu0 0
  %515 = vmatpush1.bf16.msra.mxu0 0
  %516 = vmatprep.subr.bf16.mxu0 0
  %517 = vmatpush1.bf16.msra.mxu0 0
  %518 = vmatprep.subr.bf16.mxu0 0
  %519 = vmatpush1.bf16.msra.mxu0 0
  %520 = vmatprep.subr.bf16.mxu0 0
  %521 = vmatpush1.bf16.msra.mxu0 0
  %522 = vmatprep.subr.bf16.mxu0 0
  %523 = vmatpush1.bf16.msra.mxu0 0
  %524 = vmatprep.subr.bf16.mxu0 0
  %525 = vmatpush1.bf16.msra.mxu0 0
  %526 = vmatprep.subr.bf16.mxu0 0
  %527 = vmatpush1.bf16.msra.mxu0 0
  %528 = vmatprep.subr.bf16.mxu0 0
  %529 = vmatpush1.bf16.msra.mxu0 0
  %530 = vmatprep.subr.bf16.mxu0 0
  %531 = vmatpush1.bf16.msra.mxu0 0
  %532 = vmatprep.subr.bf16.mxu0 0
  %533 = vmatpush1.bf16.msra.mxu0 0
  %534 = vmatprep.subr.bf16.mxu0 0
  %535 = vmatpush1.bf16.msra.mxu0 0
  %536 = vmatprep.subr.bf16.mxu0 0
  %537 = vmatpush1.bf16.msra.mxu0 0
  %538 = vmatprep.subr.bf16.mxu0 0
  %539 = vmatpush1.bf16.msra.mxu0 0
  %540 = vmatprep.mubr.bf16.mxu0 0
  %541 = vmatmul.mubr.bf16.gmra.mrb[0].mxu0 %v497
  %v542 = vpop.f32.mrb[0].mxu0
  %v543 = vadd.f32 0.0, %v542
  %v544 = vpop.f32.mrb[0].mxu0
  %v545 = vpop.f32.mrb[0].mxu0
  %v546 = vadd.f32 0.0, %v545
  %v547 = vpop.f32.mrb[0].mxu0
  %548 = vmatprep.mubr.bf16.mxu0 0
  %549 = vmatmul.mubr.bf16.gmra.mrb[0].mxu0 %v500
  %v550 = vpop.f32.mrb[0].mxu0
  %v551 = vadd.f32 0.0, %v550
  %v552 = vpop.f32.mrb[0].mxu0
  %v553 = vpop.f32.mrb[0].mxu0
  %v554 = vadd.f32 0.0, %v553
  %v555 = vpop.f32.mrb[0].mxu0
  %556 = vmatprep.mubr.bf16.mxu0 0
  %557 = vmatmul.mubr.bf16.gmra.mrb[0].mxu0 %v503
  %v558 = vpop.f32.mrb[0].mxu0
  %v559 = vadd.f32 0.0, %v558
  %v560 = vpop.f32.mrb[0].mxu0
  %v561 = vpop.f32.mrb[0].mxu0
  %v562 = vadd.f32 0.0, %v561
  %v563 = vpop.f32.mrb[0].mxu0
  %564 = vmatprep.mubr.bf16.mxu0 0
  %565 = vmatmul.mubr.bf16.gmra.mrb[0].mxu0 %v506
  %v566 = vpop.f32.mrb[0].mxu0
  %v567 = vadd.f32 0.0, %v566
  %v568 = vpop.f32.mrb[0].mxu0
  %v569 = vpop.f32.mrb[0].mxu0
  %v570 = vadd.f32 0.0, %v569
  %v571 = vpop.f32.mrb[0].mxu0
  %572 = vdwg.mxu0
  %v573 = vld [vmem:[%s7 + $0x4] sm:$0x1]
  %v574 = vlaneseq
  %v575 = vshrl.u32 %v574, 7
  %v576 = vsub.s32 0, %v575
  %v577 = vrot.slane %v573, %v576
  %v578 = vmul.f32 %v543, %v577
  %v579 = vmul.f32 %v546, %v577
  %v580 = vld [vmem:[%s7 + $0x5] sm:$0x1]
  %v581 = vlaneseq
  %v582 = vshrl.u32 %v581, 7
  %v583 = vsub.s32 0, %v582
  %v584 = vrot.slane %v580, %v583
  %v585 = vmul.f32 %v551, %v584
  %v586 = vmul.f32 %v554, %v584
  %v587 = vadd.f32 %v578, %v585
  %v588 = vadd.f32 %v579, %v586
  %v589 = vld [vmem:[%s7 + $0x6] sm:$0x1]
  %v590 = vlaneseq
  %v591 = vshrl.u32 %v590, 7
  %v592 = vsub.s32 0, %v591
  %v593 = vrot.slane %v589, %v592
  %v594 = vmul.f32 %v559, %v593
  %v595 = vmul.f32 %v562, %v593
  %v596 = vadd.f32 %v587, %v594
  %v597 = vadd.f32 %v588, %v595
  %v598 = vld [vmem:[%s7 + $0x7] sm:$0x1]
  %v599 = vlaneseq
  %v600 = vshrl.u32 %v599, 7
  %v601 = vsub.s32 0, %v600
  %v602 = vrot.slane %v598, %v601
  %v603 = vmul.f32 %v567, %v602
  %v604 = vmul.f32 %v570, %v602
  %v605 = vadd.f32 %v596, %v603
  %v606 = vadd.f32 %v597, %v604
  %v607 = vld [vmem:[%s8 + $0x1] sm:$0x1]
  %v608 = vlaneseq
  %v609 = vshrl.u32 %v608, 7
  %v610 = vsub.s32 0, %v609
  %v611 = vrot.slane %v607, %v610
  %v612 = vadd.f32 %v605, %v611
  %v613 = vadd.f32 %v606, %v611
  %v614 = vmul.f32 %v612, 0.2
  %v615 = vmul.f32 %v613, 0.2
  %v616 = vmax.f32 %v612, %v614
  %v617 = vmax.f32 %v613, %v615
  %v618 = vld [vmem:[%s5] sm:$0xf]
  %v619 = vld [vmem:[%s5 + $0x4] sm:$0xf]
  %v620 = vld [vmem:[%s5 + $0x8] sm:$0xf]
  %v621 = vld [vmem:[%s5 + $0xc] sm:$0xf]
  %v622 = vpack.c.bf16 %v617, %v616
  %v627 = vunpack.c.l.b16 %v618
  %v628 = vunpack.c.l.b16 %v619
  %v629 = vunpack.c.l.b16 %v620
  %v630 = vunpack.c.l.b16 %v621
  %v631 = vpack.c.b16 %v628, %v627
  %v632 = vpack.c.b16 %v630, %v629
  %vm633 = vcmask 130048
  %v635 = vsel %vm633, %v631, 0
  %v638 = vsel %vm633, %v632, 0
  %640 = vmatprep.subr.bf16.mxu0 0
  %641 = vmatpush1.bf16.msra.mxu0 %v622
  %642 = vmatprep.subr.bf16.mxu0 0
  %643 = vmatpush1.bf16.msra.mxu0 0
  %644 = vmatprep.subr.bf16.mxu0 0
  %645 = vmatpush1.bf16.msra.mxu0 0
  %646 = vmatprep.subr.bf16.mxu0 0
  %647 = vmatpush1.bf16.msra.mxu0 0
  %648 = vmatprep.subr.bf16.mxu0 0
  %649 = vmatpush1.bf16.msra.mxu0 0
  %650 = vmatprep.subr.bf16.mxu0 0
  %651 = vmatpush1.bf16.msra.mxu0 0
  %652 = vmatprep.subr.bf16.mxu0 0
  %653 = vmatpush1.bf16.msra.mxu0 0
  %654 = vmatprep.subr.bf16.mxu0 0
  %655 = vmatpush1.bf16.msra.mxu0 0
  %656 = vmatprep.subr.bf16.mxu0 0
  %657 = vmatpush1.bf16.msra.mxu0 0
  %658 = vmatprep.subr.bf16.mxu0 0
  %659 = vmatpush1.bf16.msra.mxu0 0
  %660 = vmatprep.subr.bf16.mxu0 0
  %661 = vmatpush1.bf16.msra.mxu0 0
  %662 = vmatprep.subr.bf16.mxu0 0
  %663 = vmatpush1.bf16.msra.mxu0 0
  %664 = vmatprep.subr.bf16.mxu0 0
  %665 = vmatpush1.bf16.msra.mxu0 0
  %666 = vmatprep.subr.bf16.mxu0 0
  %667 = vmatpush1.bf16.msra.mxu0 0
  %668 = vmatprep.subr.bf16.mxu0 0
  %669 = vmatpush1.bf16.msra.mxu0 0
  %670 = vmatprep.subr.bf16.mxu0 0
  %671 = vmatpush1.bf16.msra.mxu0 0
  %672 = vmatprep.mubr.bf16.mxu0 0
  %673 = vmatmul.mubr.bf16.gmra.mrb[0].mxu0 %v635
  %v674 = vpop.f32.mrb[0].mxu0
  %v675 = vadd.f32 0.0, %v674
  %v676 = vpop.f32.mrb[0].mxu0
  %v677 = vpop.f32.mrb[0].mxu0
  %v678 = vadd.f32 0.0, %v677
  %v679 = vpop.f32.mrb[0].mxu0
  %680 = vmatprep.mubr.bf16.mxu0 0
  %681 = vmatmul.mubr.bf16.gmra.mrb[0].mxu0 %v638
  %v682 = vpop.f32.mrb[0].mxu0
  %v683 = vadd.f32 0.0, %v682
  %v684 = vpop.f32.mrb[0].mxu0
  %v685 = vpop.f32.mrb[0].mxu0
  %v686 = vadd.f32 0.0, %v685
  %v687 = vpop.f32.mrb[0].mxu0
  %688 = vdwg.mxu0
  %v689 = vld [vmem:[%s7 + $0x8] sm:$0x1]
  %v690 = vlaneseq
  %v691 = vshrl.u32 %v690, 7
  %v692 = vsub.s32 0, %v691
  %v693 = vrot.slane %v689, %v692
  %v694 = vmul.f32 %v675, %v693
  %v695 = vld [vmem:[%s7 + $0x9] sm:$0x1]
  %v696 = vlaneseq
  %v697 = vshrl.u32 %v696, 7
  %v698 = vsub.s32 0, %v697
  %v699 = vrot.slane %v695, %v698
  %v700 = vmul.f32 %v678, %v699
  %v701 = vadd.f32 %v694, %v700
  %v702 = vld [vmem:[%s7 + $0xa] sm:$0x1]
  %v703 = vlaneseq
  %v704 = vshrl.u32 %v703, 7
  %v705 = vsub.s32 0, %v704
  %v706 = vrot.slane %v702, %v705
  %v707 = vmul.f32 %v683, %v706
  %v708 = vadd.f32 %v701, %v707
  %v709 = vld [vmem:[%s7 + $0xb] sm:$0x1]
  %v710 = vlaneseq
  %v711 = vshrl.u32 %v710, 7
  %v712 = vsub.s32 0, %v711
  %v713 = vrot.slane %v709, %v712
  %v714 = vmul.f32 %v686, %v713
  %v715 = vadd.f32 %v708, %v714
  %v716 = vld [vmem:[%s8 + $0x2] sm:$0x1]
  %v717 = vlaneseq
  %v718 = vshrl.u32 %v717, 7
  %v719 = vsub.s32 0, %v718
  %v720 = vrot.slane %v716, %v719
  %v721 = vadd.f32 %v715, %v720
  %v722 = vmul.f32 %v721, 0.2
  %v723 = vmax.f32 %v721, %v722
  %v724 = vld [vmem:[%s6] sm:$0xf]
  %v725 = vld [vmem:[%s6 + $0x4] sm:$0xf]
  %v726 = vld [vmem:[%s6 + $0x8] sm:$0xf]
  %v727 = vpack.c.bf16 %v723, %v723
  %v731 = vunpack.c.l.b16 %v724
  %v732 = vunpack.c.l.b16 %v725
  %v733 = vunpack.c.l.b16 %v726
  %v734 = vpack.c.b16 %v732, %v731
  %v735 = vpack.c.b16 %v733, %v733
  %vm736 = vcmask 64512
  %v738 = vsel %vm736, %v734, 0
  %v741 = vsel %vm736, %v735, 0
  %vm743 = vcmask 1043456
  %v745 = vsel %vm743, %v727, 0
  %747 = vmatprep.subr.bf16.mxu0 0
  %748 = vmatpush1.bf16.msra.mxu0 %v745
  %749 = vmatprep.subr.bf16.mxu0 0
  %750 = vmatpush1.bf16.msra.mxu0 0
  %751 = vmatprep.subr.bf16.mxu0 0
  %752 = vmatpush1.bf16.msra.mxu0 0
  %753 = vmatprep.subr.bf16.mxu0 0
  %754 = vmatpush1.bf16.msra.mxu0 0
  %755 = vmatprep.subr.bf16.mxu0 0
  %756 = vmatpush1.bf16.msra.mxu0 0
  %757 = vmatprep.subr.bf16.mxu0 0
  %758 = vmatpush1.bf16.msra.mxu0 0
  %759 = vmatprep.subr.bf16.mxu0 0
  %760 = vmatpush1.bf16.msra.mxu0 0
  %761 = vmatprep.subr.bf16.mxu0 0
  %762 = vmatpush1.bf16.msra.mxu0 0
  %763 = vmatprep.subr.bf16.mxu0 0
  %764 = vmatpush1.bf16.msra.mxu0 0
  %765 = vmatprep.subr.bf16.mxu0 0
  %766 = vmatpush1.bf16.msra.mxu0 0
  %767 = vmatprep.subr.bf16.mxu0 0
  %768 = vmatpush1.bf16.msra.mxu0 0
  %769 = vmatprep.subr.bf16.mxu0 0
  %770 = vmatpush1.bf16.msra.mxu0 0
  %771 = vmatprep.subr.bf16.mxu0 0
  %772 = vmatpush1.bf16.msra.mxu0 0
  %773 = vmatprep.subr.bf16.mxu0 0
  %774 = vmatpush1.bf16.msra.mxu0 0
  %775 = vmatprep.subr.bf16.mxu0 0
  %776 = vmatpush1.bf16.msra.mxu0 0
  %777 = vmatprep.subr.bf16.mxu0 0
  %778 = vmatpush1.bf16.msra.mxu0 0
  %779 = vmatprep.mubr.bf16.mxu0 0
  %780 = vmatmul.mubr.bf16.gmra.mrb[0].mxu0 %v738
  %v781 = vpop.f32.mrb[0].mxu0
  %v782 = vadd.f32 0.0, %v781
  %v783 = vpop.f32.mrb[0].mxu0
  %v784 = vpop.f32.mrb[0].mxu0
  %v785 = vadd.f32 0.0, %v784
  %v786 = vpop.f32.mrb[0].mxu0
  %787 = vmatprep.mubr.bf16.mxu0 0
  %788 = vmatmul.mubr.bf16.gmra.mrb[0].mxu0 %v741
  %v789 = vpop.f32.mrb[0].mxu0
  %v790 = vadd.f32 0.0, %v789
  %v791 = vpop.f32.mrb[0].mxu0
  %v792 = vpop.f32.mrb[0].mxu0
  %v793 = vpop.f32.mrb[0].mxu0
  %794 = vdwg.mxu0
  %v795 = vld [vmem:[%s7 + $0xc] sm:$0x1]
  %v796 = vlaneseq
  %v797 = vshrl.u32 %v796, 7
  %v798 = vsub.s32 0, %v797
  %v799 = vrot.slane %v795, %v798
  %v800 = vmul.f32 %v782, %v799
  %v801 = vld [vmem:[%s7 + $0xd] sm:$0x1]
  %v802 = vlaneseq
  %v803 = vshrl.u32 %v802, 7
  %v804 = vsub.s32 0, %v803
  %v805 = vrot.slane %v801, %v804
  %v806 = vmul.f32 %v785, %v805
  %v807 = vadd.f32 %v800, %v806
  %v808 = vld [vmem:[%s7 + $0xe] sm:$0x1]
  %v809 = vlaneseq
  %v810 = vshrl.u32 %v809, 7
  %v811 = vsub.s32 0, %v810
  %v812 = vrot.slane %v808, %v811
  %v813 = vmul.f32 %v790, %v812
  %v814 = vadd.f32 %v807, %v813
  %v815 = vld [vmem:[%s8 + $0x3] sm:$0x1]
  %v816 = vlaneseq
  %v817 = vshrl.u32 %v816, 7
  %v818 = vsub.s32 0, %v817
  %v819 = vrot.slane %v815, %v818
  %v820 = vadd.f32 %v814, %v819
  %v821 = vmul.f32 %v820, 0.2
  %v822 = vmax.f32 %v820, %v821
  %v823 = vld [vmem:[%s7 + $0x10] sm:$0x1]
  %v824 = vmul.f32 %v822, %v823
  %v825 = vld [vmem:[%s7 + $0x11] sm:$0x1]
  %v827 = vrot.slane %v825, 7
  %v829 = vmul.f32 %v822, %v827
  %v831 = vrot.slane %v829, 1
  %v833 = vadd.f32 %v824, %v831
  %v834 = vld [vmem:[%s7 + $0x12] sm:$0x1]
  %v836 = vrot.slane %v834, 6
  %v838 = vmul.f32 %v822, %v836
  %v840 = vrot.slane %v838, 2
  %v842 = vadd.f32 %v833, %v840
  %v843 = vld [vmem:[%s8 + $0x4] sm:$0x1]
  %v844 = vadd.f32 %v842, %v843
  %845 = vst [vmem:[%s9] sm:$0x1] %v844
  // Predicated region
  $region38: #{disclocal_forward.1} parent=0 // pred_check
    _
  $region39: #{disclocal_forward.1} parent=0 // pred_check_branch
    %847 = sbr.rel (0) target = $region41
  $region40: #{disclocal_forward.1} parent=0 // pred_region
    _
  $region41: #{disclocal_forward.1} parent=0 // pred_fallthru
    _
  // Predicated region
  $region42: #{disclocal_forward.1} parent=0 // pred_check
    _
  $region43: #{disclocal_forward.1} parent=0 // pred_check_branch
    %849 = sbr.rel (0) target = $region45
  $region44: #{disclocal_forward.1} parent=0 // pred_region
    _
  $region45: #{disclocal_forward.1} parent=0 // pred_fallthru
    _

</llo_original>
